<compile_context>
chip_gen: v7x
topology: tpu7x:2x2x1
jax: 0.10.0
libtpu: 0.0.40
codegen_flags: <defaults>
</compile_context>

<pallas_src>
import functools

import jax
import jax.numpy as jnp
import numpy as np
from jax.experimental import pallas as pl
from jax.experimental.pallas import tpu as pltpu


# ---------------------------------------------------------------------------
# Pallas kernel
# ---------------------------------------------------------------------------
def _simgcl_kernel(ego0_ref, adj_ref, out_ref, ego_sc, nxt_sc,
                   *, n_layers, nk, tk, adj_resident):
    """One grid step: partial product ego_t[:, k-block] @ A_norm[k-block, :].

    grid = (n_layers, nk)   -- layer axis outermost, reduction (k) axis last.
      ego0_ref : (1, D, tk)  f32   per-k block of the transposed initial embeds
      adj_ref  : (nk|1, tk, N) bf16  resident full adjacency OR streamed stripe
      out_ref  : (D, N)      f32   grid-resident; doubles as layer-sum accum
      ego_sc   : (nk, D, tk) f32   LHS feed for layers >= 1 (VMEM resident)
      nxt_sc   : (D, N)      f32   accumulator for the layer being computed
    """
    l = pl.program_id(0)
    k = pl.program_id(1)

    # Layer-sum accumulator lives in the (grid-resident) output block.
    @pl.when((l == 0) & (k == 0))
    def _init():
        out_ref[...] = jnp.zeros_like(out_ref)

    # (tk, N) bf16 stripe of the symmetric normalized adjacency.
    adj_blk = adj_ref[k] if adj_resident else adj_ref[0]

    def _accumulate(lhs_f32):
        # (D, tk) bf16 x (tk, N) bf16 -> (D, N), f32 MXU accumulation.
        part = jnp.dot(lhs_f32.astype(adj_blk.dtype), adj_blk,
                       preferred_element_type=jnp.float32)

        @pl.when(k == 0)
        def _assign():                    # no zero-then-add on the first k step
            nxt_sc[...] = part

        @pl.when(k != 0)
        def _add():
            nxt_sc[...] += part

    @pl.when(l == 0)
    def _layer0():
        _accumulate(ego0_ref[0])          # LHS straight from the input block

    @pl.when(l != 0)
    def _layer_n():
        _accumulate(ego_sc[k])            # LHS from the previous layer (f32)

    # End of layer: fold into the running layer sum and stage the next layer's
    # LHS, processed per tk-wide chunk so only a few vregs are live at a time.
    @pl.when(k == nk - 1)
    def _finish_layer():
        for kk in range(nk):              # static chunk loop
            sl = slice(kk * tk, (kk + 1) * tk)
            chunk = nxt_sc[:, sl]                       # (D, tk) f32
            out_ref[:, sl] = out_ref[:, sl] + chunk     # running sum of layers
            ego_sc[kk] = chunk                          # f32 feed, no re-quant

    @pl.when((l == n_layers - 1) & (k == nk - 1))
    def _emit():
        inv = 1.0 / n_layers
        for kk in range(nk):
            sl = slice(kk * tk, (kk + 1) * tk)
            out_ref[:, sl] = out_ref[:, sl] * inv


# ---------------------------------------------------------------------------
# Wrapper
# ---------------------------------------------------------------------------
def simgcl_forward(norm_adj, user_emb, item_emb, n_layers):
    """SimGCL encoder forward (gaussian=False) via pallas_call.

    Contract:
      * `norm_adj` is the SYMMETRIC normalization D^-1/2 A D^-1/2: the kernel
        computes ego.T @ A == (A @ ego).T.  Asymmetric normalizations (e.g.
        random-walk D^-1 A) would silently give wrong results.
      * `norm_adj` should already be bf16 (it is static across training steps,
        so the cast must not be paid per forward call); we cast here only as a
        fallback.
    """
    n_user = user_emb.shape[0]
    ego = jnp.concatenate([user_emb, item_emb], axis=0).astype(jnp.float32)
    N, D = ego.shape
    assert norm_adj.shape == (N, N)
    assert N % 128 == 0, "N (= user_num + item_num) must be a multiple of 128"
    if norm_adj.dtype != jnp.bfloat16:
        norm_adj = norm_adj.astype(jnp.bfloat16)   # fallback; prefer pre-cast

    # --- per-generation VMEM budget ------------------------------------------
    try:
        vmem_phys = int(pltpu.get_tpu_info().vmem_capacity_bytes)
    except Exception:
        vmem_phys = 64 * 1024 * 1024               # conservative (v7x) fallback
    budget = int(vmem_phys * 0.75)

    # Reduction tile: largest multiple of 128 dividing N; allowed to grow to
    # 1024 on 128-MiB-VMEM parts (v5e/v6e), capped at 512 on 64-MiB parts.
    tk_cap = 1024 if vmem_phys >= (100 << 20) else 512
    tk = 128
    for cand in (1024, 512, 256, 128):
        if cand <= tk_cap and N % cand == 0:
            tk = cand
            break
    nk = N // tk

    # --- VMEM accounting & adjacency residency decision -----------------------
    itm = norm_adj.dtype.itemsize                  # 2 for bf16
    fixed = (nk * D * tk * 4        # ego_sc (f32)
             + D * N * 4            # nxt_sc (f32)
             + D * N * 4            # out block (f32, grid-resident)
             + 2 * D * tk * 4)      # double-buffered per-k ego0 input block
    adj_resident_bytes = 2 * N * N * itm           # assume double-buffered
    adj_resident = fixed + adj_resident_bytes <= budget
    vmem_limit = budget

    # --- operand layouts -------------------------------------------------------
    # Adjacency pre-blocked as (nk, tk, N): contiguous reshape, no data movement.
    adj3 = norm_adj.reshape(nk, tk, N)
    # Transposed, k-blocked initial embeddings: block kk = ego.T[:, kk*tk:(kk+1)*tk]
    ego_blk = ego.T.reshape(D, nk, tk).transpose(1, 0, 2)      # (nk, D, tk) f32

    if adj_resident:
        # Constant index_map -> DMA'd from HBM exactly once, then VMEM-resident
        # across all layers / k steps.
        adj_spec = pl.BlockSpec((nk, tk, N), lambda l, k: (0, 0, 0))
    else:
        # Streamed (tk, N) stripes, double-buffered by the BlockSpec pipeline.
        # (Re-streamed every layer; unavoidable with the in-call layer carry.)
        adj_spec = pl.BlockSpec((1, tk, N), lambda l, k: (0, k, 0))

    out_t = pl.pallas_call(
        functools.partial(_simgcl_kernel, n_layers=n_layers, nk=nk, tk=tk,
                          adj_resident=adj_resident),
        out_shape=jax.ShapeDtypeStruct((D, N), jnp.float32),
        grid_spec=pltpu.PrefetchScalarGridSpec(
            num_scalar_prefetch=0,
            grid=(n_layers, nk),
            in_specs=[
                pl.BlockSpec((1, D, tk), lambda l, k: (k, 0, 0)),  # ego0 per-k
                adj_spec,                                          # adjacency
            ],
            out_specs=pl.BlockSpec((D, N), lambda l, k: (0, 0)),
            scratch_shapes=[
                pltpu.VMEM((nk, D, tk), jnp.float32),   # ego feed (layers >= 1)
                pltpu.VMEM((D, N), jnp.float32),        # current-layer accum
            ],
        ),
        compiler_params=pltpu.CompilerParams(
            dimension_semantics=("arbitrary", "arbitrary"),
            vmem_limit_bytes=vmem_limit),
    )(ego_blk, adj3)

    out = out_t.T                                   # (N, D)
    return out[:n_user], out[n_user:]


# ---------------------------------------------------------------------------
# Glue: deterministic parameter / adjacency construction (plain JAX) + ref.
# ---------------------------------------------------------------------------
def xavier_uniform(key, shape):
    fan_in, fan_out = shape[0], shape[1]
    bound = float(np.sqrt(6.0 / (fan_in + fan_out)))
    return jax.random.uniform(key, shape, jnp.float32, -bound, bound)


def build_norm_adj(key, user_num, item_num, density=0.15):
    """Symmetric-normalized bipartite adjacency D^-1/2 A D^-1/2 (dense)."""
    R = jax.random.bernoulli(key, density, (user_num, item_num)).astype(jnp.float32)
    N = user_num + item_num
    A = jnp.zeros((N, N), jnp.float32)
    A = A.at[:user_num, user_num:].set(R)
    A = A.at[user_num:, :user_num].set(R.T)
    deg = A.sum(axis=1)
    d_inv_sqrt = jnp.where(deg > 0, jax.lax.rsqrt(jnp.maximum(deg, 1e-12)), 0.0)
    return A * d_inv_sqrt[:, None] * d_inv_sqrt[None, :]


def reference_forward(norm_adj, user_emb, item_emb, n_layers):
    """Precise float64 numpy reference mirroring the PyTorch forward."""
    adj = np.asarray(norm_adj, dtype=np.float64)
    ego = np.concatenate(
        [np.asarray(user_emb), np.asarray(item_emb)], axis=0).astype(np.float64)
    acc = np.zeros_like(ego)
    for _ in range(n_layers):
        ego = adj @ ego
        acc = acc + ego
    out = acc / n_layers
    n_user = user_emb.shape[0]
    return out[:n_user], out[n_user:]


if __name__ == "__main__":
    user_num, item_num, emb_size, n_layers = 48, 80, 32, 3
    eps = 0.1  # only used on the (omitted) gaussian=True path

    root = jax.random.PRNGKey(0)
    k_user, k_item, k_adj = jax.random.split(root, 3)

    user_emb = xavier_uniform(k_user, (user_num, emb_size))
    item_emb = xavier_uniform(k_item, (item_num, emb_size))
    norm_adj_f32 = build_norm_adj(k_adj, user_num, item_num)

    # Contract check: the kernel relies on D^-1/2 A D^-1/2 being symmetric.
    adj_np = np.asarray(norm_adj_f32)
    assert np.allclose(adj_np, adj_np.T), "norm_adj must be symmetric"

    # One-time setup cast: the adjacency is static across training steps, so
    # the f32->bf16 conversion is paid once here, not per forward call.
    norm_adj_bf16 = jax.block_until_ready(norm_adj_f32.astype(jnp.bfloat16))

    u_all, i_all = simgcl_forward(norm_adj_bf16, user_emb, item_emb, n_layers)
    u_all = jax.block_until_ready(u_all)
    i_all = jax.block_until_ready(i_all)

    u_ref, i_ref = reference_forward(norm_adj_f32, user_emb, item_emb, n_layers)
    # bf16 adjacency (f32 accumulation / f32 ego feed) vs f64 reference.
    np.testing.assert_allclose(np.asarray(u_all), u_ref, rtol=5e-2, atol=1e-2)
    np.testing.assert_allclose(np.asarray(i_all), i_ref, rtol=5e-2, atol=1e-2)

    print("KERNEL_OK")
</pallas_src>

<mosaic_0001>
module attributes {stable_mosaic.version = 11 : i64} {
  func.func @_simgcl_kernel(%arg0: i32, %arg1: i32, %arg2: memref<1x32x128xf32, #tpu.memory_space<vmem>>, %arg3: memref<1x128x128xbf16, #tpu.memory_space<vmem>>, %arg4: memref<32x128xf32, #tpu.memory_space<vmem>>, %arg5: memref<1x32x128xf32, #tpu.memory_space<vmem>>, %arg6: memref<32x128xf32, #tpu.memory_space<vmem>>) attributes {dimension_semantics = [#tpu.dimension_semantics<arbitrary>, #tpu.dimension_semantics<arbitrary>], iteration_bounds = array<i64: 3, 1>, scalar_prefetch = 0 : i64, scratch_operands = 2 : i64, tpu.core_type = #tpu.core_type<tc>, window_params = [{transform_indices = @transform_0, window_bounds = array<i64: 1, 32, 128>}, {pipeline_mode = #tpu.pipeline_mode<synchronous>, transform_indices = @transform_1, window_bounds = array<i64: 1, 128, 128>}, {pipeline_mode = #tpu.pipeline_mode<synchronous>, transform_indices = @transform_2, window_bounds = array<i64: 32, 128>}]} {
    %c0_i32 = arith.constant 0 : i32
    %0 = arith.cmpi eq, %arg0, %c0_i32 : i32
    %c0_i32_0 = arith.constant 0 : i32
    %1 = arith.cmpi eq, %arg1, %c0_i32_0 : i32
    %2 = arith.andi %0, %1 : i1
    %3 = arith.extui %2 : i1 to i32
    %c0_i32_1 = arith.constant 0 : i32
    %4 = arith.cmpi ne, %3, %c0_i32_1 : i32
    scf.if %4 {
      %cst = arith.constant 0.000000e+00 : f32
      %22 = vector.broadcast %cst : f32 to vector<32x128xf32>
      %c0_11 = arith.constant 0 : index
      %c0_12 = arith.constant 0 : index
      %23 = vector.load %arg4[%c0_11, %c0_12] : memref<32x128xf32, #tpu.memory_space<vmem>>, vector<32x128xf32>
      tpu.vector_store %arg4[%c0_11, %c0_12], %22 {strides = array<i32>} : memref<32x128xf32, #tpu.memory_space<vmem>>, vector<32x128xf32>,
    } else {
    }
    %5 = arith.index_cast %arg1 : i32 to index
    %c0 = arith.constant 0 : index
    %c0_2 = arith.constant 0 : index
    %6 = vector.load %arg3[%5, %c0, %c0_2] : memref<1x128x128xbf16, #tpu.memory_space<vmem>>, vector<1x128x128xbf16>
    %7 = vector.shape_cast %6 : vector<1x128x128xbf16> to vector<128x128xbf16>
    %c0_i32_3 = arith.constant 0 : i32
    %8 = arith.cmpi eq, %arg0, %c0_i32_3 : i32
    %9 = arith.extui %8 : i1 to i32
    %c0_i32_4 = arith.constant 0 : i32
    %10 = arith.cmpi ne, %9, %c0_i32_4 : i32
    scf.if %10 {
      %c0_11 = arith.constant 0 : index
      %c0_12 = arith.constant 0 : index
      %c0_13 = arith.constant 0 : index
      %22 = vector.load %arg2[%c0_11, %c0_12, %c0_13] : memref<1x32x128xf32, #tpu.memory_space<vmem>>, vector<1x32x128xf32>
      %23 = vector.shape_cast %22 : vector<1x32x128xf32> to vector<32x128xf32>
      %24 = arith.truncf %23 : vector<32x128xf32> to vector<32x128xbf16>
      %cst = arith.constant dense<0.000000e+00> : vector<32x128xf32>
      %25 = tpu.matmul %24, %7, %cst {dimension_numbers = #tpu.dot_dimension_numbers<[1], [0], [0], [1], [0, 0, 1, 1], [], []>} : vector<32x128xbf16>, vector<128x128xbf16>, vector<32x128xf32> -> vector<32x128xf32>
      %c0_i32_14 = arith.constant 0 : i32
      %26 = arith.cmpi eq, %arg1, %c0_i32_14 : i32
      %27 = arith.extui %26 : i1 to i32
      %c0_i32_15 = arith.constant 0 : i32
      %28 = arith.cmpi ne, %27, %c0_i32_15 : i32
      scf.if %28 {
        %c0_18 = arith.constant 0 : index
        %c0_19 = arith.constant 0 : index
        %32 = vector.load %arg6[%c0_18, %c0_19] : memref<32x128xf32, #tpu.memory_space<vmem>>, vector<32x128xf32>
        tpu.vector_store %arg6[%c0_18, %c0_19], %25 {strides = array<i32>} : memref<32x128xf32, #tpu.memory_space<vmem>>, vector<32x128xf32>,
      } else {
      }
      %c0_i32_16 = arith.constant 0 : i32
      %29 = arith.cmpi ne, %arg1, %c0_i32_16 : i32
      %30 = arith.extui %29 : i1 to i32
      %c0_i32_17 = arith.constant 0 : i32
      %31 = arith.cmpi ne, %30, %c0_i32_17 : i32
      scf.if %31 {
        %c0_18 = arith.constant 0 : index
        %c0_19 = arith.constant 0 : index
        %32 = vector.load %arg6[%c0_18, %c0_19] : memref<32x128xf32, #tpu.memory_space<vmem>>, vector<32x128xf32>
        %33 = arith.addf %32, %25 : vector<32x128xf32>
        %c0_20 = arith.constant 0 : index
        %c0_21 = arith.constant 0 : index
        %34 = vector.load %arg6[%c0_20, %c0_21] : memref<32x128xf32, #tpu.memory_space<vmem>>, vector<32x128xf32>
        tpu.vector_store %arg6[%c0_20, %c0_21], %33 {strides = array<i32>} : memref<32x128xf32, #tpu.memory_space<vmem>>, vector<32x128xf32>,
      } else {
      }
    } else {
    }
    %c0_i32_5 = arith.constant 0 : i32
    %11 = arith.cmpi ne, %arg0, %c0_i32_5 : i32
    %12 = arith.extui %11 : i1 to i32
    %c0_i32_6 = arith.constant 0 : i32
    %13 = arith.cmpi ne, %12, %c0_i32_6 : i32
    scf.if %13 {
      %22 = arith.index_cast %arg1 : i32 to index
      %c0_11 = arith.constant 0 : index
      %c0_12 = arith.constant 0 : index
      %23 = vector.load %arg5[%22, %c0_11, %c0_12] : memref<1x32x128xf32, #tpu.memory_space<vmem>>, vector<1x32x128xf32>
      %24 = vector.shape_cast %23 : vector<1x32x128xf32> to vector<32x128xf32>
      %25 = arith.truncf %24 : vector<32x128xf32> to vector<32x128xbf16>
      %cst = arith.constant dense<0.000000e+00> : vector<32x128xf32>
      %26 = tpu.matmul %25, %7, %cst {dimension_numbers = #tpu.dot_dimension_numbers<[1], [0], [0], [1], [0, 0, 1, 1], [], []>} : vector<32x128xbf16>, vector<128x128xbf16>, vector<32x128xf32> -> vector<32x128xf32>
      %c0_i32_13 = arith.constant 0 : i32
      %27 = arith.cmpi eq, %arg1, %c0_i32_13 : i32
      %28 = arith.extui %27 : i1 to i32
      %c0_i32_14 = arith.constant 0 : i32
      %29 = arith.cmpi ne, %28, %c0_i32_14 : i32
      scf.if %29 {
        %c0_17 = arith.constant 0 : index
        %c0_18 = arith.constant 0 : index
        %33 = vector.load %arg6[%c0_17, %c0_18] : memref<32x128xf32, #tpu.memory_space<vmem>>, vector<32x128xf32>
        tpu.vector_store %arg6[%c0_17, %c0_18], %26 {strides = array<i32>} : memref<32x128xf32, #tpu.memory_space<vmem>>, vector<32x128xf32>,
      } else {
      }
      %c0_i32_15 = arith.constant 0 : i32
      %30 = arith.cmpi ne, %arg1, %c0_i32_15 : i32
      %31 = arith.extui %30 : i1 to i32
      %c0_i32_16 = arith.constant 0 : i32
      %32 = arith.cmpi ne, %31, %c0_i32_16 : i32
      scf.if %32 {
        %c0_17 = arith.constant 0 : index
        %c0_18 = arith.constant 0 : index
        %33 = vector.load %arg6[%c0_17, %c0_18] : memref<32x128xf32, #tpu.memory_space<vmem>>, vector<32x128xf32>
        %34 = arith.addf %33, %26 : vector<32x128xf32>
        %c0_19 = arith.constant 0 : index
        %c0_20 = arith.constant 0 : index
        %35 = vector.load %arg6[%c0_19, %c0_20] : memref<32x128xf32, #tpu.memory_space<vmem>>, vector<32x128xf32>
        tpu.vector_store %arg6[%c0_19, %c0_20], %34 {strides = array<i32>} : memref<32x128xf32, #tpu.memory_space<vmem>>, vector<32x128xf32>,
      } else {
      }
    } else {
    }
    %c0_i32_7 = arith.constant 0 : i32
    %14 = arith.cmpi eq, %arg1, %c0_i32_7 : i32
    %15 = arith.extui %14 : i1 to i32
    %c0_i32_8 = arith.constant 0 : i32
    %16 = arith.cmpi ne, %15, %c0_i32_8 : i32
    scf.if %16 {
      %c0_11 = arith.constant 0 : index
      %c0_12 = arith.constant 0 : index
      %22 = vector.load %arg6[%c0_11, %c0_12] : memref<32x128xf32, #tpu.memory_space<vmem>>, vector<32x128xf32>
      %c0_13 = arith.constant 0 : index
      %c0_14 = arith.constant 0 : index
      %23 = vector.load %arg4[%c0_13, %c0_14] : memref<32x128xf32, #tpu.memory_space<vmem>>, vector<32x128xf32>
      %24 = arith.addf %23, %22 : vector<32x128xf32>
      %c0_15 = arith.constant 0 : index
      %c0_16 = arith.constant 0 : index
      %25 = vector.load %arg4[%c0_15, %c0_16] : memref<32x128xf32, #tpu.memory_space<vmem>>, vector<32x128xf32>
      tpu.vector_store %arg4[%c0_15, %c0_16], %24 {strides = array<i32>} : memref<32x128xf32, #tpu.memory_space<vmem>>, vector<32x128xf32>,
      %c0_17 = arith.constant 0 : index
      %c0_18 = arith.constant 0 : index
      %c0_19 = arith.constant 0 : index
      %26 = vector.load %arg5[%c0_17, %c0_18, %c0_19] : memref<1x32x128xf32, #tpu.memory_space<vmem>>, vector<1x32x128xf32>
      %27 = vector.shape_cast %26 : vector<1x32x128xf32> to vector<32x128xf32>
      %28 = vector.shape_cast %22 : vector<32x128xf32> to vector<1x32x128xf32>
      tpu.vector_store %arg5[%c0_17, %c0_18, %c0_19], %28 {strides = array<i32>} : memref<1x32x128xf32, #tpu.memory_space<vmem>>, vector<1x32x128xf32>,
    } else {
    }
    %c2_i32 = arith.constant 2 : i32
    %17 = arith.cmpi eq, %arg0, %c2_i32 : i32
    %c0_i32_9 = arith.constant 0 : i32
    %18 = arith.cmpi eq, %arg1, %c0_i32_9 : i32
    %19 = arith.andi %17, %18 : i1
    %20 = arith.extui %19 : i1 to i32
    %c0_i32_10 = arith.constant 0 : i32
    %21 = arith.cmpi ne, %20, %c0_i32_10 : i32
    scf.if %21 {
      %c0_11 = arith.constant 0 : index
      %c0_12 = arith.constant 0 : index
      %22 = vector.load %arg4[%c0_11, %c0_12] : memref<32x128xf32, #tpu.memory_space<vmem>>, vector<32x128xf32>
      %cst = arith.constant 0.333333343 : f32
      %23 = vector.broadcast %cst : f32 to vector<32x128xf32>
      %24 = arith.mulf %22, %23 : vector<32x128xf32>
      %c0_13 = arith.constant 0 : index
      %c0_14 = arith.constant 0 : index
      %25 = vector.load %arg4[%c0_13, %c0_14] : memref<32x128xf32, #tpu.memory_space<vmem>>, vector<32x128xf32>
      tpu.vector_store %arg4[%c0_13, %c0_14], %24 {strides = array<i32>} : memref<32x128xf32, #tpu.memory_space<vmem>>, vector<32x128xf32>,
    } else {
    }
    return
  }
  func.func @transform_0(%arg0: i32, %arg1: i32) -> (i32, i32, i32) {
    %c0_i32 = arith.constant 0 : i32
    %c0_i32_0 = arith.constant 0 : i32
    %c0_i32_1 = arith.constant 0 : i32
    return %arg1, %c0_i32, %c0_i32_0 : i32, i32, i32
  }
  func.func @transform_1(%arg0: i32, %arg1: i32) -> (i32, i32, i32) {
    %c0_i32 = arith.constant 0 : i32
    %c0_i32_0 = arith.constant 0 : i32
    %c0_i32_1 = arith.constant 0 : i32
    %c0_i32_2 = arith.constant 0 : i32
    return %c0_i32, %c0_i32_0, %c0_i32_1 : i32, i32, i32
  }
  func.func @transform_2(%arg0: i32, %arg1: i32) -> (i32, i32) {
    %c0_i32 = arith.constant 0 : i32
    %c0_i32_0 = arith.constant 0 : i32
    %c0_i32_1 = arith.constant 0 : i32
    return %c0_i32, %c0_i32_0 : i32, i32
  }
}

</mosaic_0001>

<llo_original>
// kernel: tpu_custom_call.1
$region0: #{tpu_custom_call.1}
  #allocation0 [shape = 'u32[]', space=smem, size = 0x4, offset = 0x4, fixed_abs, tag = 'smem constant byte address 0x4 - core index']
  #allocation1 [shape = 'u32[144,128]{1,0:T(1,128)}', space=vmem, size = 0x12000, scoped, tag = 'internal scratch']
  #allocation2 [shape = 'f32[1,32,128]{2,1,0:T(8,128)}', space=vmem, size = 0x4000, scoped, tag = 'scratch operand']
  #allocation3 [shape = 'f32[32,128]{1,0:T(8,128)}', space=vmem, size = 0x4000, scoped, tag = 'scratch operand']
  %s0 = inlined_call_operand.hbm [shape: f32[1,32,128], index: 0, kind: input, shape index: {}]
  %s1 = inlined_call_operand.hbm [shape: bf16[1,128,128], index: 1, kind: input, shape index: {}]
  %s2 = inlined_call_operand.hbm [shape: f32[32,128], index: 2, kind: output, shape index: {}]
  %s3 = sld [smem:[#allocation0]]
  $region85: #{tpu_custom_call.1} parent=0
    _
  %s5 = ssub.s32 1, %s3
  %s6 = scalar_select 0, %s5, %s3
  $region1: #{tpu_custom_call.1} parent=0
    #allocation4 [shape = 'u8[16384]{0}', space=vmem, size = 0x4000, scoped, tag = 'input window, operand 0, single buffered']
    #allocation5 [shape = 's32[2]{0}', space=sflag, size = 0x8, scoped, tag = 'scoped memory for tpu_custom_call.1']
    #allocation6 [shape = 's32[2]{0}', space=sflag, size = 0x8, scoped, tag = 'scoped memory for tpu_custom_call.1']
    #allocation7 [shape = 'u8[32768]{0}', space=vmem, size = 0x8000, scoped, tag = 'input window, operand 1, single buffered']
    #allocation8 [shape = 's32[1]{0}', space=sflag, size = 0x4, scoped, tag = 'scoped memory for tpu_custom_call.1']
    #allocation9 [shape = 'u8[16384]{0}', space=vmem, size = 0x4000, scoped, tag = 'output window, operand 0, single buffered']
    %7 = vsyncpa [#allocation5], 0
    %8 = vsyncpa [#allocation8], 0
    %9 = vsyncpa [#allocation6], 0
    loop: start=0, step=1, limit=5
    $region2: #{tpu_custom_call.1} parent=1 // loop_pre_header
      _
    $region3: #{tpu_custom_call.1} parent=1 // loop_header
      %s11 = sphi 0, %s15
      %p12 = scmp.ge.s32.totalorder %s11, 5
      %s18 = sphi 0, %s30
      %s19 = sphi 0, %s26
      %s20 = sphi 0, %s18
      %s21 = sphi 0, %s19
      %s22 = sphi 0, %s20
      %s23 = sphi 0, %s21
      %s33 = sphi 0, %s35
      %s36 = sphi 0, %s33
      %s37 = sphi 0, %s36
      %s53 = sphi 0, %s37
      %s57 = sphi 0, %s57
      %s59 = sphi 0, %s57
      %s60 = sphi 0, %s59
      %s74 = sphi 0, %s60
      %s78 = sphi 0, %s78
      %s80 = sphi 0, %s78
      %s81 = sphi 0, %s80
      %s95 = sphi 0, %s81
    $region4: #{tpu_custom_call.1} parent=1 // loop_header_branch
      %14 = sbr.rel (%p12) target = $region8
    $region5: #{tpu_custom_call.1} parent=1 // loop_body
      %s16 = ssub.s32 %s11, 1
      %s17 = ssub.s32 %s11, 2
      %s24 = sadd.s32 1, %s19
      %p25 = scmp.ge.s32.totalorder %s24, 1
      %s26 = scalar_select %p25, 0, %s24
      %s27 = sadd.s32 1, %s18
      %s28 = scalar_select %p25, %s27, %s18
      %p29 = scmp.ge.s32.totalorder %s28, 3
      %s30 = scalar_select %p29, 0, %s28
      %s31 = ssub.s32 %s19, %s26
      %p32 = scmp.eq.s32.totalorder %s31, 0
      %s34 = sadd.s32 %s33, 1
      %s35 = scalar_select %p32, %s33, %s34
      %p38 = pneg %p32
      %p39 = scmp.eq.s32.totalorder %s11, 2
      %p40 = por %p38, %p39
      %p41 = scmp.ne.s32.totalorder %s33, %s36
      %p42 = scmp.eq.s32.totalorder %s11, 0
      %p43 = por %p41, %p42
      %p44 = scmp.ne.s32.totalorder %s33, %s36
      %p45 = scmp.eq.s32.totalorder %s16, 2
      %p46 = por %p44, %p45
      %p47 = scmp.ne.s32.totalorder %s36, %s37
      %p48 = scmp.eq.s32.totalorder %s16, 0
      %p49 = por %p47, %p48
      %p50 = scmp.ne.s32.totalorder %s36, %s37
      %p51 = scmp.eq.s32.totalorder %s17, 2
      %p52 = por %p50, %p51
      %p54 = scmp.ne.s32.totalorder %s37, %s53
      %p55 = scmp.eq.s32.totalorder %s17, 0
      %p56 = por %p54, %p55
      %s58 = sadd.s32 %s57, 1
      %p61 = scmp.eq.s32.totalorder %s11, 2
      %p62 = scmp.ne.s32.totalorder %s57, %s59
      %p63 = scmp.eq.s32.totalorder %s11, 0
      %p64 = por %p62, %p63
      %p65 = scmp.ne.s32.totalorder %s57, %s59
      %p66 = scmp.eq.s32.totalorder %s16, 2
      %p67 = por %p65, %p66
      %p68 = scmp.ne.s32.totalorder %s59, %s60
      %p69 = scmp.eq.s32.totalorder %s16, 0
      %p70 = por %p68, %p69
      %p71 = scmp.ne.s32.totalorder %s59, %s60
      %p72 = scmp.eq.s32.totalorder %s17, 2
      %p73 = por %p71, %p72
      %p75 = scmp.ne.s32.totalorder %s60, %s74
      %p76 = scmp.eq.s32.totalorder %s17, 0
      %p77 = por %p75, %p76
      %s79 = sadd.s32 %s78, 1
      %p82 = scmp.eq.s32.totalorder %s11, 2
      %p83 = scmp.ne.s32.totalorder %s78, %s80
      %p84 = scmp.eq.s32.totalorder %s11, 0
      %p85 = por %p83, %p84
      %p86 = scmp.ne.s32.totalorder %s78, %s80
      %p87 = scmp.eq.s32.totalorder %s16, 2
      %p88 = por %p86, %p87
      %p89 = scmp.ne.s32.totalorder %s80, %s81
      %p90 = scmp.eq.s32.totalorder %s16, 0
      %p91 = por %p89, %p90
      %p92 = scmp.ne.s32.totalorder %s80, %s81
      %p93 = scmp.eq.s32.totalorder %s17, 2
      %p94 = por %p92, %p93
      %p96 = scmp.ne.s32.totalorder %s81, %s95
      %p97 = scmp.eq.s32.totalorder %s17, 0
      %p98 = por %p96, %p97
      %p99 = scmp.le.s32.totalorder 1, %s11
      %p100 = scmp.lt.s32.totalorder %s11, 4
      %p101 = pnand %p99, %p100
      %p102 = pneg %p101
      // Predicated region
      $region9: #{tpu_custom_call.1} parent=5 // pred_check
        _
      $region10: #{tpu_custom_call.1} parent=5 // pred_check_branch
        %104 = sbr.rel (%p101) target = $region12
      $region11: #{tpu_custom_call.1} parent=5 // pred_region
        %s105 = ssub.s32 %s11, 1
        // Predicated region
        $region13: #{tpu_custom_call.1} parent=11 // pred_check
          %p106 = pneg %p49
        $region14: #{tpu_custom_call.1} parent=11 // pred_check_branch
          %108 = sbr.rel (%p106) target = $region16
        $region15: #{tpu_custom_call.1} parent=11 // pred_region
          %s110 = ssub.s32 512, 512
          %111 = vsyncadd [#allocation5], %s110
          %s112 = smul.addr %s21, 4
          %s113 = smul.addr %s112, 128
          %s114 = scalar_lea.hbm %s0, %s113
          %s115 = sshll.u32 [#allocation4], 4
          %s116 = int_to_ptr.vmem [resolvable:$true] %s115
          %121 = dma.hbm_to_vmem [thread:$0]  %s114, 512, %s116, [#allocation5], 128, 128, 8
        $region16: #{tpu_custom_call.1} parent=11 // pred_fallthru
          _
        // Predicated region
        $region17: #{tpu_custom_call.1} parent=11 // pred_check
          %p122 = pneg %p70
        $region18: #{tpu_custom_call.1} parent=11 // pred_check_branch
          %124 = sbr.rel (%p122) target = $region20
        $region19: #{tpu_custom_call.1} parent=11 // pred_region
          %s126 = ssub.s32 1024, 1024
          %127 = vsyncadd [#allocation8], %s126
          %s128 = sshll.u32 [#allocation7], 4
          %s129 = int_to_ptr.vmem [resolvable:$true] %s128
          %134 = dma.hbm_to_vmem [thread:$0]  %s1, 1024, %s129, [#allocation8], 64, 64, 4
        $region20: #{tpu_custom_call.1} parent=11 // pred_fallthru
          _
      $region12: #{tpu_custom_call.1} parent=5 // pred_fallthru
        _
      %p135 = scmp.lt.s32.totalorder %s11, 3
      // Predicated region
      $region21: #{tpu_custom_call.1} parent=5 // pred_check
        %p136 = pneg %p135
      $region22: #{tpu_custom_call.1} parent=5 // pred_check_branch
        %138 = sbr.rel (%p136) target = $region24
      $region23: #{tpu_custom_call.1} parent=5 // pred_region
        _
      $region24: #{tpu_custom_call.1} parent=5 // pred_fallthru
        _
      %p139 = scmp.le.s32.totalorder 1, %s11
      %p140 = scmp.lt.s32.totalorder %s11, 4
      %p141 = pnand %p139, %p140
      %p142 = pneg %p141
      // Predicated region
      $region25: #{tpu_custom_call.1} parent=5 // pred_check
        _
      $region26: #{tpu_custom_call.1} parent=5 // pred_check_branch
        %144 = sbr.rel (%p141) target = $region28
      $region27: #{tpu_custom_call.1} parent=5 // pred_region
        %s145 = ssub.s32 %s11, 1
        // Predicated region
        $region29: #{tpu_custom_call.1} parent=27 // pred_check
          %p146 = pneg %p49
        $region30: #{tpu_custom_call.1} parent=27 // pred_check_branch
          %148 = sbr.rel (%p146) target = $region32
        $region31: #{tpu_custom_call.1} parent=27 // pred_region
          %149 = dma.done [#allocation5], 512
        $region32: #{tpu_custom_call.1} parent=27 // pred_fallthru
          _
        // Predicated region
        $region33: #{tpu_custom_call.1} parent=27 // pred_check
          %p150 = pneg %p70
        $region34: #{tpu_custom_call.1} parent=27 // pred_check_branch
          %152 = sbr.rel (%p150) target = $region36
        $region35: #{tpu_custom_call.1} parent=27 // pred_region
          %153 = dma.done [#allocation8], 1024
        $region36: #{tpu_custom_call.1} parent=27 // pred_fallthru
          _
        %p154 = pneg %p49
        %p155 = pneg %p46
        %p156 = pneg %p70
        %p157 = pneg %p67
        %p158 = pneg %p91
        %p159 = pneg %p88
        %p161 = scmp.eq.s32.totalorder %s20, 0
        %p162 = scmp.eq.s32.totalorder %s21, 0
        %p163 = pnand %p161, %p162
        %p164 = pneg %p163
        // Predicated region
        $region37: #{tpu_custom_call.1} parent=27 // pred_check
          _
        $region38: #{tpu_custom_call.1} parent=27 // pred_check_branch
          %166 = sbr.rel (%p163) target = $region40
        $region39: #{tpu_custom_call.1} parent=27 // pred_region
          %167 = vst [vmem:[#allocation9] sm:$0xff] 0.0
          %168 = vst [vmem:[#allocation9 + $0x8] sm:$0xff] 0.0
          %169 = vst [vmem:[#allocation9 + $0x10] sm:$0xff] 0.0
          %170 = vst [vmem:[#allocation9 + $0x18] sm:$0xff] 0.0
        $region40: #{tpu_custom_call.1} parent=27 // pred_fallthru
          _
        %s171 = smul.u32 %s21, 16
        %s172 = smul.addr %s171, 4
        %s173 = scalar_lea.vmem [#allocation7], %s172
        %v174 = vld [vmem:[%s173] sm:$0xf]
        %v175 = vld [vmem:[%s173 + $0x4] sm:$0xf]
        %v176 = vld [vmem:[%s173 + $0x8] sm:$0xf]
        %v177 = vld [vmem:[%s173 + $0xc] sm:$0xf]
        %v178 = vld [vmem:[%s173 + $0x10] sm:$0xf]
        %v179 = vld [vmem:[%s173 + $0x14] sm:$0xf]
        %v180 = vld [vmem:[%s173 + $0x18] sm:$0xf]
        %v181 = vld [vmem:[%s173 + $0x1c] sm:$0xf]
        %v182 = vld [vmem:[%s173 + $0x20] sm:$0xf]
        %v183 = vld [vmem:[%s173 + $0x24] sm:$0xf]
        %v184 = vld [vmem:[%s173 + $0x28] sm:$0xf]
        %v185 = vld [vmem:[%s173 + $0x2c] sm:$0xf]
        %v186 = vld [vmem:[%s173 + $0x30] sm:$0xf]
        %v187 = vld [vmem:[%s173 + $0x34] sm:$0xf]
        %v188 = vld [vmem:[%s173 + $0x38] sm:$0xf]
        %v189 = vld [vmem:[%s173 + $0x3c] sm:$0xf]
        // Predicated region
        $region41: #{tpu_custom_call.1} parent=27 // pred_check
          %p190 = pneg %p161
        $region42: #{tpu_custom_call.1} parent=27 // pred_check_branch
          %192 = sbr.rel (%p190) target = $region44
        $region43: #{tpu_custom_call.1} parent=27 // pred_region
          %v193 = vld [vmem:[#allocation4] sm:$0xff]
          %v194 = vld [vmem:[#allocation4 + $0x8] sm:$0xff]
          %v195 = vld [vmem:[#allocation4 + $0x10] sm:$0xff]
          %v196 = vld [vmem:[#allocation4 + $0x18] sm:$0xff]
          %v197 = vpack.c.bf16 %v194, %v193
          %v198 = vpack.c.bf16 %v196, %v195
          %v215 = vunpack.c.l.b16 %v174
          %v216 = vunpack.c.l.b16 %v175
          %v217 = vunpack.c.l.b16 %v176
          %v218 = vunpack.c.l.b16 %v177
          %v219 = vunpack.c.l.b16 %v178
          %v220 = vunpack.c.l.b16 %v179
          %v221 = vunpack.c.l.b16 %v180
          %v222 = vunpack.c.l.b16 %v181
          %v223 = vunpack.c.l.b16 %v182
          %v224 = vunpack.c.l.b16 %v183
          %v225 = vunpack.c.l.b16 %v184
          %v226 = vunpack.c.l.b16 %v185
          %v227 = vunpack.c.l.b16 %v186
          %v228 = vunpack.c.l.b16 %v187
          %v229 = vunpack.c.l.b16 %v188
          %v230 = vunpack.c.l.b16 %v189
          %v231 = vpack.c.b16 %v216, %v215
          %v232 = vpack.c.b16 %v218, %v217
          %v233 = vpack.c.b16 %v220, %v219
          %v234 = vpack.c.b16 %v222, %v221
          %v235 = vpack.c.b16 %v224, %v223
          %v236 = vpack.c.b16 %v226, %v225
          %v237 = vpack.c.b16 %v228, %v227
          %v238 = vpack.c.b16 %v230, %v229
          %247 = vmatprep.subr.bf16.mxu0 0
          %248 = vmatpush1.bf16.msra.mxu0 %v231
          %249 = vmatprep.subr.bf16.mxu0 0
          %250 = vmatpush1.bf16.msra.mxu0 %v232
          %251 = vmatprep.subr.bf16.mxu0 0
          %252 = vmatpush1.bf16.msra.mxu0 %v233
          %253 = vmatprep.subr.bf16.mxu0 0
          %254 = vmatpush1.bf16.msra.mxu0 %v234
          %255 = vmatprep.subr.bf16.mxu0 0
          %256 = vmatpush1.bf16.msra.mxu0 %v235
          %257 = vmatprep.subr.bf16.mxu0 0
          %258 = vmatpush1.bf16.msra.mxu0 %v236
          %259 = vmatprep.subr.bf16.mxu0 0
          %260 = vmatpush1.bf16.msra.mxu0 %v237
          %261 = vmatprep.subr.bf16.mxu0 0
          %262 = vmatpush1.bf16.msra.mxu0 %v238
          %263 = vmatprep.subr.bf16.mxu0 0
          %264 = vmatpush1.bf16.msra.mxu0 0
          %265 = vmatprep.subr.bf16.mxu0 0
          %266 = vmatpush1.bf16.msra.mxu0 0
          %267 = vmatprep.subr.bf16.mxu0 0
          %268 = vmatpush1.bf16.msra.mxu0 0
          %269 = vmatprep.subr.bf16.mxu0 0
          %270 = vmatpush1.bf16.msra.mxu0 0
          %271 = vmatprep.subr.bf16.mxu0 0
          %272 = vmatpush1.bf16.msra.mxu0 0
          %273 = vmatprep.subr.bf16.mxu0 0
          %274 = vmatpush1.bf16.msra.mxu0 0
          %275 = vmatprep.subr.bf16.mxu0 0
          %276 = vmatpush1.bf16.msra.mxu0 0
          %277 = vmatprep.subr.bf16.mxu0 0
          %278 = vmatpush1.bf16.msra.mxu0 0
          %279 = vmatprep.mubr.bf16.mxu0 0
          %280 = vmatmul.mubr.bf16.gmra.mrb[0].mxu0 %v197
          %v281 = vpop.f32.mrb[0].mxu0
          %v282 = vadd.f32 0.0, %v281
          %v283 = vpop.f32.mrb[0].mxu0
          %v284 = vpop.f32.mrb[0].mxu0
          %v285 = vadd.f32 0.0, %v284
          %v286 = vpop.f32.mrb[0].mxu0
          %287 = vmatprep.mubr.bf16.mxu0 0
          %288 = vmatmul.mubr.bf16.gmra.mrb[0].mxu0 %v198
          %v289 = vpop.f32.mrb[0].mxu0
          %v290 = vadd.f32 0.0, %v289
          %v291 = vpop.f32.mrb[0].mxu0
          %v292 = vpop.f32.mrb[0].mxu0
          %v293 = vadd.f32 0.0, %v292
          %v294 = vpop.f32.mrb[0].mxu0
          %295 = vdwg.mxu0
          // Predicated region
          $region45: #{tpu_custom_call.1} parent=43 // pred_check
            %p296 = pneg %p162
          $region46: #{tpu_custom_call.1} parent=43 // pred_check_branch
            %298 = sbr.rel (%p296) target = $region48
          $region47: #{tpu_custom_call.1} parent=43 // pred_region
            %299 = vst [vmem:[#allocation3] sm:$0xff] %v282
            %300 = vst [vmem:[#allocation3 + $0x8] sm:$0xff] %v285
            %301 = vst [vmem:[#allocation3 + $0x10] sm:$0xff] %v290
            %302 = vst [vmem:[#allocation3 + $0x18] sm:$0xff] %v293
          $region48: #{tpu_custom_call.1} parent=43 // pred_fallthru
            _
          %p303 = scmp.ne.s32.totalorder %s21, 0
          // Predicated region
          $region49: #{tpu_custom_call.1} parent=43 // pred_check
            %p304 = pneg %p303
          $region50: #{tpu_custom_call.1} parent=43 // pred_check_branch
            %306 = sbr.rel (%p304) target = $region52
          $region51: #{tpu_custom_call.1} parent=43 // pred_region
            %v307 = vld [vmem:[#allocation3] sm:$0xff]
            %v308 = vld [vmem:[#allocation3 + $0x8] sm:$0xff]
            %v309 = vld [vmem:[#allocation3 + $0x10] sm:$0xff]
            %v310 = vld [vmem:[#allocation3 + $0x18] sm:$0xff]
            %v311 = vadd.f32 %v307, %v282
            %v312 = vadd.f32 %v308, %v285
            %v313 = vadd.f32 %v309, %v290
            %v314 = vadd.f32 %v310, %v293
            %315 = vst [vmem:[#allocation3] sm:$0xff] %v311
            %316 = vst [vmem:[#allocation3 + $0x8] sm:$0xff] %v312
            %317 = vst [vmem:[#allocation3 + $0x10] sm:$0xff] %v313
            %318 = vst [vmem:[#allocation3 + $0x18] sm:$0xff] %v314
          $region52: #{tpu_custom_call.1} parent=43 // pred_fallthru
            _
        $region44: #{tpu_custom_call.1} parent=27 // pred_fallthru
          _
        %p319 = scmp.ne.s32.totalorder %s20, 0
        // Predicated region
        $region53: #{tpu_custom_call.1} parent=27 // pred_check
          %p320 = pneg %p319
        $region54: #{tpu_custom_call.1} parent=27 // pred_check_branch
          %322 = sbr.rel (%p320) target = $region56
        $region55: #{tpu_custom_call.1} parent=27 // pred_region
          %s323 = smul.u32 %s21, 32
          %s324 = scalar_lea.vmem [#allocation2], %s323
          %v325 = vld [vmem:[%s324] sm:$0xff]
          %v326 = vld [vmem:[%s324 + $0x8] sm:$0xff]
          %v327 = vld [vmem:[%s324 + $0x10] sm:$0xff]
          %v328 = vld [vmem:[%s324 + $0x18] sm:$0xff]
          %v329 = vpack.c.bf16 %v326, %v325
          %v330 = vpack.c.bf16 %v328, %v327
          %v347 = vunpack.c.l.b16 %v174
          %v348 = vunpack.c.l.b16 %v175
          %v349 = vunpack.c.l.b16 %v176
          %v350 = vunpack.c.l.b16 %v177
          %v351 = vunpack.c.l.b16 %v178
          %v352 = vunpack.c.l.b16 %v179
          %v353 = vunpack.c.l.b16 %v180
          %v354 = vunpack.c.l.b16 %v181
          %v355 = vunpack.c.l.b16 %v182
          %v356 = vunpack.c.l.b16 %v183
          %v357 = vunpack.c.l.b16 %v184
          %v358 = vunpack.c.l.b16 %v185
          %v359 = vunpack.c.l.b16 %v186
          %v360 = vunpack.c.l.b16 %v187
          %v361 = vunpack.c.l.b16 %v188
          %v362 = vunpack.c.l.b16 %v189
          %v363 = vpack.c.b16 %v348, %v347
          %v364 = vpack.c.b16 %v350, %v349
          %v365 = vpack.c.b16 %v352, %v351
          %v366 = vpack.c.b16 %v354, %v353
          %v367 = vpack.c.b16 %v356, %v355
          %v368 = vpack.c.b16 %v358, %v357
          %v369 = vpack.c.b16 %v360, %v359
          %v370 = vpack.c.b16 %v362, %v361
          %379 = vmatprep.subr.bf16.mxu0 0
          %380 = vmatpush1.bf16.msra.mxu0 %v363
          %381 = vmatprep.subr.bf16.mxu0 0
          %382 = vmatpush1.bf16.msra.mxu0 %v364
          %383 = vmatprep.subr.bf16.mxu0 0
          %384 = vmatpush1.bf16.msra.mxu0 %v365
          %385 = vmatprep.subr.bf16.mxu0 0
          %386 = vmatpush1.bf16.msra.mxu0 %v366
          %387 = vmatprep.subr.bf16.mxu0 0
          %388 = vmatpush1.bf16.msra.mxu0 %v367
          %389 = vmatprep.subr.bf16.mxu0 0
          %390 = vmatpush1.bf16.msra.mxu0 %v368
          %391 = vmatprep.subr.bf16.mxu0 0
          %392 = vmatpush1.bf16.msra.mxu0 %v369
          %393 = vmatprep.subr.bf16.mxu0 0
          %394 = vmatpush1.bf16.msra.mxu0 %v370
          %395 = vmatprep.subr.bf16.mxu0 0
          %396 = vmatpush1.bf16.msra.mxu0 0
          %397 = vmatprep.subr.bf16.mxu0 0
          %398 = vmatpush1.bf16.msra.mxu0 0
          %399 = vmatprep.subr.bf16.mxu0 0
          %400 = vmatpush1.bf16.msra.mxu0 0
          %401 = vmatprep.subr.bf16.mxu0 0
          %402 = vmatpush1.bf16.msra.mxu0 0
          %403 = vmatprep.subr.bf16.mxu0 0
          %404 = vmatpush1.bf16.msra.mxu0 0
          %405 = vmatprep.subr.bf16.mxu0 0
          %406 = vmatpush1.bf16.msra.mxu0 0
          %407 = vmatprep.subr.bf16.mxu0 0
          %408 = vmatpush1.bf16.msra.mxu0 0
          %409 = vmatprep.subr.bf16.mxu0 0
          %410 = vmatpush1.bf16.msra.mxu0 0
          %411 = vmatprep.mubr.bf16.mxu0 0
          %412 = vmatmul.mubr.bf16.gmra.mrb[0].mxu0 %v329
          %v413 = vpop.f32.mrb[0].mxu0
          %v414 = vadd.f32 0.0, %v413
          %v415 = vpop.f32.mrb[0].mxu0
          %v416 = vpop.f32.mrb[0].mxu0
          %v417 = vadd.f32 0.0, %v416
          %v418 = vpop.f32.mrb[0].mxu0
          %419 = vmatprep.mubr.bf16.mxu0 0
          %420 = vmatmul.mubr.bf16.gmra.mrb[0].mxu0 %v330
          %v421 = vpop.f32.mrb[0].mxu0
          %v422 = vadd.f32 0.0, %v421
          %v423 = vpop.f32.mrb[0].mxu0
          %v424 = vpop.f32.mrb[0].mxu0
          %v425 = vadd.f32 0.0, %v424
          %v426 = vpop.f32.mrb[0].mxu0
          %427 = vdwg.mxu0
          // Predicated region
          $region57: #{tpu_custom_call.1} parent=55 // pred_check
            %p428 = pneg %p162
          $region58: #{tpu_custom_call.1} parent=55 // pred_check_branch
            %430 = sbr.rel (%p428) target = $region60
          $region59: #{tpu_custom_call.1} parent=55 // pred_region
            %431 = vst [vmem:[#allocation3] sm:$0xff] %v414
            %432 = vst [vmem:[#allocation3 + $0x8] sm:$0xff] %v417
            %433 = vst [vmem:[#allocation3 + $0x10] sm:$0xff] %v422
            %434 = vst [vmem:[#allocation3 + $0x18] sm:$0xff] %v425
          $region60: #{tpu_custom_call.1} parent=55 // pred_fallthru
            _
          %p435 = scmp.ne.s32.totalorder %s21, 0
          // Predicated region
          $region61: #{tpu_custom_call.1} parent=55 // pred_check
            %p436 = pneg %p435
          $region62: #{tpu_custom_call.1} parent=55 // pred_check_branch
            %438 = sbr.rel (%p436) target = $region64
          $region63: #{tpu_custom_call.1} parent=55 // pred_region
            %v439 = vld [vmem:[#allocation3] sm:$0xff]
            %v440 = vld [vmem:[#allocation3 + $0x8] sm:$0xff]
            %v441 = vld [vmem:[#allocation3 + $0x10] sm:$0xff]
            %v442 = vld [vmem:[#allocation3 + $0x18] sm:$0xff]
            %v443 = vadd.f32 %v439, %v414
            %v444 = vadd.f32 %v440, %v417
            %v445 = vadd.f32 %v441, %v422
            %v446 = vadd.f32 %v442, %v425
            %447 = vst [vmem:[#allocation3] sm:$0xff] %v443
            %448 = vst [vmem:[#allocation3 + $0x8] sm:$0xff] %v444
            %449 = vst [vmem:[#allocation3 + $0x10] sm:$0xff] %v445
            %450 = vst [vmem:[#allocation3 + $0x18] sm:$0xff] %v446
          $region64: #{tpu_custom_call.1} parent=55 // pred_fallthru
            _
        $region56: #{tpu_custom_call.1} parent=27 // pred_fallthru
          _
        // Predicated region
        $region65: #{tpu_custom_call.1} parent=27 // pred_check
          %p451 = pneg %p162
        $region66: #{tpu_custom_call.1} parent=27 // pred_check_branch
          %453 = sbr.rel (%p451) target = $region68
        $region67: #{tpu_custom_call.1} parent=27 // pred_region
          %v454 = vld [vmem:[#allocation3] sm:$0xff]
          %v455 = vld [vmem:[#allocation3 + $0x8] sm:$0xff]
          %v456 = vld [vmem:[#allocation3 + $0x10] sm:$0xff]
          %v457 = vld [vmem:[#allocation3 + $0x18] sm:$0xff]
          %v458 = vld [vmem:[#allocation9] sm:$0xff]
          %v459 = vld [vmem:[#allocation9 + $0x8] sm:$0xff]
          %v460 = vld [vmem:[#allocation9 + $0x10] sm:$0xff]
          %v461 = vld [vmem:[#allocation9 + $0x18] sm:$0xff]
          %v462 = vadd.f32 %v458, %v454
          %v463 = vadd.f32 %v459, %v455
          %v464 = vadd.f32 %v460, %v456
          %v465 = vadd.f32 %v461, %v457
          %466 = vst [vmem:[#allocation9] sm:$0xff] %v462
          %467 = vst [vmem:[#allocation9 + $0x8] sm:$0xff] %v463
          %468 = vst [vmem:[#allocation9 + $0x10] sm:$0xff] %v464
          %469 = vst [vmem:[#allocation9 + $0x18] sm:$0xff] %v465
          %470 = vst [vmem:[#allocation2] sm:$0xff] %v454
          %471 = vst [vmem:[#allocation2 + $0x8] sm:$0xff] %v455
          %472 = vst [vmem:[#allocation2 + $0x10] sm:$0xff] %v456
          %473 = vst [vmem:[#allocation2 + $0x18] sm:$0xff] %v457
        $region68: #{tpu_custom_call.1} parent=27 // pred_fallthru
          _
        %p474 = scmp.eq.s32.totalorder %s20, 2
        %p475 = pnand %p474, %p162
        %p476 = pneg %p475
        // Predicated region
        $region69: #{tpu_custom_call.1} parent=27 // pred_check
          _
        $region70: #{tpu_custom_call.1} parent=27 // pred_check_branch
          %478 = sbr.rel (%p475) target = $region72
        $region71: #{tpu_custom_call.1} parent=27 // pred_region
          %v479 = vld [vmem:[#allocation9] sm:$0xff]
          %v480 = vld [vmem:[#allocation9 + $0x8] sm:$0xff]
          %v481 = vld [vmem:[#allocation9 + $0x10] sm:$0xff]
          %v482 = vld [vmem:[#allocation9 + $0x18] sm:$0xff]
          %v483 = vmul.f32 %v479, 0.33333334
          %v484 = vmul.f32 %v480, 0.33333334
          %v485 = vmul.f32 %v481, 0.33333334
          %v486 = vmul.f32 %v482, 0.33333334
          %487 = vst [vmem:[#allocation9] sm:$0xff] %v483
          %488 = vst [vmem:[#allocation9 + $0x8] sm:$0xff] %v484
          %489 = vst [vmem:[#allocation9 + $0x10] sm:$0xff] %v485
          %490 = vst [vmem:[#allocation9 + $0x18] sm:$0xff] %v486
        $region72: #{tpu_custom_call.1} parent=27 // pred_fallthru
          _
        // Predicated region
        $region73: #{tpu_custom_call.1} parent=27 // pred_check
          %p491 = pneg %p88
        $region74: #{tpu_custom_call.1} parent=27 // pred_check_branch
          %493 = sbr.rel (%p491) target = $region76
        $region75: #{tpu_custom_call.1} parent=27 // pred_region
          %s495 = ssub.s32 512, 512
          %496 = vsyncadd [#allocation6], %s495
          %s497 = sshll.u32 [#allocation9], 4
          %s498 = int_to_ptr.vmem [resolvable:$true] %s497
          %503 = dma.vmem_to_hbm [thread:$0]  %s498, 512, %s2, [#allocation6], 128, 128, 8
        $region76: #{tpu_custom_call.1} parent=27 // pred_fallthru
          _
        // Predicated region
        $region77: #{tpu_custom_call.1} parent=27 // pred_check
          %p504 = pneg %p88
        $region78: #{tpu_custom_call.1} parent=27 // pred_check_branch
          %506 = sbr.rel (%p504) target = $region80
        $region79: #{tpu_custom_call.1} parent=27 // pred_region
          %507 = dma.done [#allocation6], 512
        $region80: #{tpu_custom_call.1} parent=27 // pred_fallthru
          _
      $region28: #{tpu_custom_call.1} parent=5 // pred_fallthru
        _
      %p508 = scmp.le.s32.totalorder 2, %s11
      // Predicated region
      $region81: #{tpu_custom_call.1} parent=5 // pred_check
        %p509 = pneg %p508
      $region82: #{tpu_custom_call.1} parent=5 // pred_check_branch
        %511 = sbr.rel (%p509) target = $region84
      $region83: #{tpu_custom_call.1} parent=5 // pred_region
        %s512 = ssub.s32 %s11, 2
      $region84: #{tpu_custom_call.1} parent=5 // pred_fallthru
        _
    $region6: #{tpu_custom_call.1} parent=1 // loop_footer
      %s15 = sadd.s32 1, %s11
    $region7: #{tpu_custom_call.1} parent=1 // loop_footer_branch
      %10 = sbr.rel target = $region3
    $region8: #{tpu_custom_call.1} parent=1 // loop_exit
      _
    %513 = vsyncpa [#allocation5], 1
    %s514 = scalar_lea.sflag [#allocation5], 1
    %515 = vsyncpa %s514, 1
    %516 = vsyncpa [#allocation8], 1
    %517 = vsyncpa [#allocation6], 1
    %s518 = scalar_lea.sflag [#allocation6], 1
    %519 = vsyncpa %s518, 1

</llo_original>
